<compile_context>
chip_gen: v7x
topology: tpu7x:2x2x1
jax: 0.10.0
libtpu: 0.0.40
codegen_flags: <defaults>
</compile_context>

<pallas_src>
import functools
import math

import jax
import jax.numpy as jnp
from jax.experimental import pallas as pl
from jax.experimental.pallas import tpu as pltpu

NEG_INF = -1e9  # large negative instead of -inf (avoids NaN rows in softmax)


# ------------------------------ small helpers ------------------------------

def _ceil_to(x, m):
    return (x + m - 1) // m * m


def _pad2d(a, rows, cols):
    pr, pc = rows - a.shape[0], cols - a.shape[1]
    if pr or pc:
        a = jnp.pad(a, ((0, pr), (0, pc)))
    return a


# ------------------------- tiled linear (bf16 MXU) --------------------------

def _matmul_kernel(x_ref, w_ref, b_ref, o_ref, acc_ref, *, activation):
    k = pl.program_id(2)

    @pl.when(k == 0)
    def _():
        acc_ref[...] = jnp.zeros_like(acc_ref)

    acc_ref[...] += jnp.dot(x_ref[...], w_ref[...],
                            preferred_element_type=jnp.float32)

    @pl.when(k == pl.num_programs(2) - 1)
    def _():
        y = acc_ref[...] + b_ref[...]
        if activation == "relu":
            y = jnp.maximum(y, 0.0)
        o_ref[...] = y.astype(o_ref.dtype)


def pallas_matmul(x2d, w, b, activation=None, bm=256, bn=256, bk=512):
    """y = act(x @ W + b).  x2d: (M, K) f32, w: (K, N) f32, b: (N,) f32 -> f32.

    Inputs are cast to bf16 at the call boundary; accumulation is f32 in a VMEM
    scratch.  Dims are padded to tile multiples and the result is sliced back.
    """
    M, K = x2d.shape
    _, N = w.shape
    tm = min(bm, _ceil_to(M, 8))
    tn = min(bn, _ceil_to(N, 128))
    tk = min(bk, _ceil_to(K, 128))
    Mp, Np, Kp = _ceil_to(M, tm), _ceil_to(N, tn), _ceil_to(K, tk)

    xb = _pad2d(x2d, Mp, Kp).astype(jnp.bfloat16)
    wb = _pad2d(w, Kp, Np).astype(jnp.bfloat16)
    bb = _pad2d(b.reshape(1, N), 1, Np)  # f32 bias

    out = pl.pallas_call(
        functools.partial(_matmul_kernel, activation=activation),
        out_shape=jax.ShapeDtypeStruct((Mp, Np), jnp.float32),
        grid=(Mp // tm, Np // tn, Kp // tk),
        in_specs=[
            pl.BlockSpec((tm, tk), lambda i, j, k: (i, k)),
            pl.BlockSpec((tk, tn), lambda i, j, k: (k, j)),
            pl.BlockSpec((1, tn), lambda i, j, k: (0, j)),
        ],
        out_specs=pl.BlockSpec((tm, tn), lambda i, j, k: (i, j)),
        scratch_shapes=[pltpu.VMEM((tm, tn), jnp.float32)],
        compiler_params=pltpu.CompilerParams(
            dimension_semantics=("parallel", "parallel", "arbitrary")),
    )(xb, wb, bb)
    return out[:M, :N]


# ------------------------------- fused FFN ----------------------------------

def _ffn_kernel(x_ref, w1_ref, b1_ref, w2_ref, b2_ref, o_ref):
    h = jnp.dot(x_ref[...], w1_ref[...],
                preferred_element_type=jnp.float32) + b1_ref[...]
    h = jnp.maximum(h, 0.0).astype(jnp.bfloat16)
    y = jnp.dot(h, w2_ref[...],
                preferred_element_type=jnp.float32) + b2_ref[...]
    o_ref[...] = y.astype(o_ref.dtype)


def pallas_ffn(x2d, w1, b1, w2, b2, bm=256):
    """relu(x @ W1 + b1) @ W2 + b2 with the intermediate kept in VMEM."""
    M, D = x2d.shape
    F = w1.shape[1]
    tm = min(bm, _ceil_to(M, 8))
    Mp, Dp, Fp = _ceil_to(M, tm), _ceil_to(D, 128), _ceil_to(F, 128)

    xb = _pad2d(x2d, Mp, Dp).astype(jnp.bfloat16)
    w1b = _pad2d(w1, Dp, Fp).astype(jnp.bfloat16)
    w2b = _pad2d(w2, Fp, Dp).astype(jnp.bfloat16)
    b1b = _pad2d(b1.reshape(1, F), 1, Fp)
    b2b = _pad2d(b2.reshape(1, D), 1, Dp)

    out = pl.pallas_call(
        _ffn_kernel,
        out_shape=jax.ShapeDtypeStruct((Mp, Dp), jnp.float32),
        grid=(Mp // tm,),
        in_specs=[
            pl.BlockSpec((tm, Dp), lambda i: (i, 0)),
            pl.BlockSpec((Dp, Fp), lambda i: (0, 0)),
            pl.BlockSpec((1, Fp), lambda i: (0, 0)),
            pl.BlockSpec((Fp, Dp), lambda i: (0, 0)),
            pl.BlockSpec((1, Dp), lambda i: (0, 0)),
        ],
        out_specs=pl.BlockSpec((tm, Dp), lambda i: (i, 0)),
        compiler_params=pltpu.CompilerParams(
            dimension_semantics=("parallel",)),
    )(xb, w1b, b1b, w2b, b2b)
    return out[:M, :D]


# ------------------------- fused residual + LayerNorm ------------------------

def _add_ln_kernel(x_ref, r_ref, g_ref, b_ref, o_ref, *, eps):
    x = x_ref[...] + r_ref[...]
    mu = jnp.mean(x, axis=-1, keepdims=True)
    xc = x - mu
    var = jnp.mean(xc * xc, axis=-1, keepdims=True)
    o_ref[...] = xc * jax.lax.rsqrt(var + eps) * g_ref[...] + b_ref[...]


def pallas_add_layernorm(x, res, gamma, beta, eps=1e-5, bm=256):
    """LayerNorm(x + res) over last dim.  x, res: (B, S, D) f32."""
    B, S, D = x.shape
    M = B * S
    tm = min(bm, _ceil_to(M, 8))
    Mp = _ceil_to(M, tm)

    xb = _pad2d(x.reshape(M, D), Mp, D)      # keep D unpadded (full-dim block)
    rb = _pad2d(res.reshape(M, D), Mp, D)

    out = pl.pallas_call(
        functools.partial(_add_ln_kernel, eps=eps),
        out_shape=jax.ShapeDtypeStruct((Mp, D), jnp.float32),
        grid=(Mp // tm,),
        in_specs=[
            pl.BlockSpec((tm, D), lambda i: (i, 0)),
            pl.BlockSpec((tm, D), lambda i: (i, 0)),
            pl.BlockSpec((1, D), lambda i: (0, 0)),
            pl.BlockSpec((1, D), lambda i: (0, 0)),
        ],
        out_specs=pl.BlockSpec((tm, D), lambda i: (i, 0)),
        compiler_params=pltpu.CompilerParams(
            dimension_semantics=("parallel",)),
    )(xb, rb, gamma.reshape(1, D), beta.reshape(1, D))
    return out[:M].reshape(B, S, D)


# ---------------------- multi-head attention (per batch) ---------------------

def _mha_kernel(q_ref, k_ref, v_ref, am_ref, kp_ref, o_ref, *, nhead, scale):
    q = q_ref[0]                       # (Sq, D) bf16
    k = k_ref[0]                       # (Sk, D) bf16
    v = v_ref[0]                       # (Sk, D) bf16
    bias = am_ref[...] + kp_ref[...]   # (Sq, Sk) additive mask, f32
    dh = q.shape[-1] // nhead

    outs = []
    for h in range(nhead):             # static small loop; heads packed on lanes
        qh = q[:, h * dh:(h + 1) * dh]
        kh = k[:, h * dh:(h + 1) * dh]
        vh = v[:, h * dh:(h + 1) * dh]
        s = jax.lax.dot_general(qh, kh, (((1,), (1,)), ((), ())),
                                preferred_element_type=jnp.float32)
        s = s * scale + bias
        s = s - jnp.max(s, axis=-1, keepdims=True)
        p = jnp.exp(s)
        p = p * pl.reciprocal(jnp.sum(p, axis=-1, keepdims=True), approx=True)
        outs.append(jnp.dot(p.astype(vh.dtype), vh,
                            preferred_element_type=jnp.float32))
    # single lane-dense (Sq, H*Dh) store
    o_ref[0] = jnp.concatenate(outs, axis=-1).astype(o_ref.dtype)


def pallas_mha(q, k, v, attn_mask, key_pad_add, nhead):
    """q: (B, Sq, D); k, v: (B, Sk, D); attn_mask: (Sq, Sk) additive f32;
    key_pad_add: (B, Sk) additive f32.  Returns (B, Sq, D) f32."""
    B, Sq, D = q.shape
    Sk = k.shape[1]
    scale = 1.0 / math.sqrt(D // nhead)
    # TODO(synk): for long sequences, additionally tile the Sq axis.
    return pl.pallas_call(
        functools.partial(_mha_kernel, nhead=nhead, scale=scale),
        out_shape=jax.ShapeDtypeStruct((B, Sq, D), jnp.float32),
        grid=(B,),
        in_specs=[
            pl.BlockSpec((1, Sq, D), lambda b: (b, 0, 0)),
            pl.BlockSpec((1, Sk, D), lambda b: (b, 0, 0)),
            pl.BlockSpec((1, Sk, D), lambda b: (b, 0, 0)),
            pl.BlockSpec((Sq, Sk), lambda b: (0, 0)),
            pl.BlockSpec((1, Sk), lambda b: (b, 0)),
        ],
        out_specs=pl.BlockSpec((1, Sq, D), lambda b: (b, 0, 0)),
        compiler_params=pltpu.CompilerParams(
            dimension_semantics=("parallel",)),
    )(q.astype(jnp.bfloat16), k.astype(jnp.bfloat16), v.astype(jnp.bfloat16),
      attn_mask, key_pad_add)


# ------------------------- model building blocks --------------------------

def multi_head_attention(x_q, x_kv, p, nhead, attn_mask=None, key_padding_mask=None):
    B, Sq, D = x_q.shape
    Sk = x_kv.shape[1]

    if x_q is x_kv:  # self-attention: fused QKV projection
        wqkv = jnp.concatenate([p["wq"], p["wk"], p["wv"]], axis=1)
        bqkv = jnp.concatenate([p["bq"], p["bk"], p["bv"]])
        qkv = pallas_matmul(x_q.reshape(B * Sq, D), wqkv, bqkv).reshape(B, Sq, 3 * D)
        q, k, v = qkv[..., :D], qkv[..., D:2 * D], qkv[..., 2 * D:]
    else:            # cross-attention: Q separate, fused KV on memory
        q = pallas_matmul(x_q.reshape(B * Sq, D), p["wq"], p["bq"]).reshape(B, Sq, D)
        wkv = jnp.concatenate([p["wk"], p["wv"]], axis=1)
        bkv = jnp.concatenate([p["bk"], p["bv"]])
        kv = pallas_matmul(x_kv.reshape(B * Sk, D), wkv, bkv).reshape(B, Sk, 2 * D)
        k, v = kv[..., :D], kv[..., D:]

    am = attn_mask.astype(jnp.float32) if attn_mask is not None \
        else jnp.zeros((Sq, Sk), jnp.float32)
    kp = jnp.where(key_padding_mask, NEG_INF, 0.0).astype(jnp.float32) \
        if key_padding_mask is not None else jnp.zeros((B, Sk), jnp.float32)

    o = pallas_mha(q, k, v, am, kp, nhead)                      # (B, Sq, D)
    return pallas_matmul(o.reshape(B * Sq, D), p["wo"], p["bo"]).reshape(B, Sq, D)


def encoder_layer(x, p, nhead, src_key_padding_mask):
    # post-norm (norm_first=False), relu activation, dropout = identity
    a = multi_head_attention(x, x, p["attn"], nhead, key_padding_mask=src_key_padding_mask)
    x = pallas_add_layernorm(x, a, p["ln1_g"], p["ln1_b"])
    B, S, D = x.shape
    h = pallas_ffn(x.reshape(B * S, D), p["w1"], p["b1"], p["w2"], p["b2"]).reshape(B, S, D)
    return pallas_add_layernorm(x, h, p["ln2_g"], p["ln2_b"])


def decoder_layer(x, memory, p, nhead, tgt_mask, tgt_key_padding_mask):
    a = multi_head_attention(x, x, p["self_attn"], nhead,
                             attn_mask=tgt_mask, key_padding_mask=tgt_key_padding_mask)
    x = pallas_add_layernorm(x, a, p["ln1_g"], p["ln1_b"])
    # module forward does not pass memory_key_padding_mask -> no mask on cross-attn
    a = multi_head_attention(x, memory, p["cross_attn"], nhead)
    x = pallas_add_layernorm(x, a, p["ln2_g"], p["ln2_b"])
    B, S, D = x.shape
    h = pallas_ffn(x.reshape(B * S, D), p["w1"], p["b1"], p["w2"], p["b2"]).reshape(B, S, D)
    return pallas_add_layernorm(x, h, p["ln3_g"], p["ln3_b"])


def positional_encoding(max_len, d_model):
    position = jnp.arange(max_len, dtype=jnp.float32)[:, None]
    div_term = jnp.exp(jnp.arange(0, d_model, 2, dtype=jnp.float32)
                       * (-math.log(10000.0) / d_model))
    pe = jnp.zeros((max_len, d_model), jnp.float32)
    pe = pe.at[:, 0::2].set(jnp.sin(position * div_term))
    pe = pe.at[:, 1::2].set(jnp.cos(position * div_term))
    return pe


def transformer_nmt_forward(params, src_input_ids, tgt_embeddings,
                            src_padding_mask=None, tgt_padding_mask=None,
                            tgt_mask=None, nhead=4):
    # frozen embedding lookup (glue) + positional encoding
    src_emb = params["src_embedding"][src_input_ids]                     # (B, Ss, Ds)
    src_emb = src_emb + params["pe_src"][None, :src_emb.shape[1], :]

    B, St, Dt = tgt_embeddings.shape
    tgt_emb = pallas_matmul(tgt_embeddings.reshape(B * St, Dt),
                            params["dec_in_w"], params["dec_in_b"]).reshape(B, St, Dt)
    tgt_emb = tgt_emb + params["pe_tgt"][None, :St, :]

    x = src_emb
    for lp in params["encoder_layers"]:
        x = encoder_layer(x, lp, nhead, src_padding_mask)
    Bm, Sm, Ds = x.shape
    memory = pallas_matmul(x.reshape(Bm * Sm, Ds),
                           params["mem_w"], params["mem_b"]).reshape(Bm, Sm, Dt)

    y = tgt_emb
    for lp in params["decoder_layers"]:
        y = decoder_layer(y, memory, lp, nhead, tgt_mask, tgt_padding_mask)

    logits = pallas_matmul(y.reshape(B * St, Dt), params["out_w"], params["out_b"])
    return logits.reshape(B, St, -1)


# ----------------------------- parameter init -----------------------------

def init_params(key, src_vocab, tgt_vocab, d_src, d_tgt, nhead,
                n_enc, n_dec, ff_dim, max_len=64):
    keys = iter(jax.random.split(key, 256))

    def dense(din, dout):
        w = jax.random.normal(next(keys), (din, dout), jnp.float32) * 0.05
        return w, jnp.zeros((dout,), jnp.float32)

    def attn_p(d):
        wq, bq = dense(d, d); wk, bk = dense(d, d)
        wv, bv = dense(d, d); wo, bo = dense(d, d)
        return dict(wq=wq, bq=bq, wk=wk, bk=bk, wv=wv, bv=bv, wo=wo, bo=bo)

    def enc_layer_p(d):
        w1, b1 = dense(d, ff_dim); w2, b2 = dense(ff_dim, d)
        return dict(attn=attn_p(d), w1=w1, b1=b1, w2=w2, b2=b2,
                    ln1_g=jnp.ones((d,), jnp.float32), ln1_b=jnp.zeros((d,), jnp.float32),
                    ln2_g=jnp.ones((d,), jnp.float32), ln2_b=jnp.zeros((d,), jnp.float32))

    def dec_layer_p(d):
        w1, b1 = dense(d, ff_dim); w2, b2 = dense(ff_dim, d)
        return dict(self_attn=attn_p(d), cross_attn=attn_p(d),
                    w1=w1, b1=b1, w2=w2, b2=b2,
                    ln1_g=jnp.ones((d,), jnp.float32), ln1_b=jnp.zeros((d,), jnp.float32),
                    ln2_g=jnp.ones((d,), jnp.float32), ln2_b=jnp.zeros((d,), jnp.float32),
                    ln3_g=jnp.ones((d,), jnp.float32), ln3_b=jnp.zeros((d,), jnp.float32))

    mem_w, mem_b = dense(d_src, d_tgt)
    dec_in_w, dec_in_b = dense(d_tgt, d_tgt)
    out_w, out_b = dense(d_tgt, tgt_vocab)
    return dict(
        src_embedding=jax.random.normal(next(keys), (src_vocab, d_src), jnp.float32),
        pe_src=positional_encoding(max_len, d_src),
        pe_tgt=positional_encoding(max_len, d_tgt),
        encoder_layers=[enc_layer_p(d_src) for _ in range(n_enc)],
        decoder_layers=[dec_layer_p(d_tgt) for _ in range(n_dec)],
        mem_w=mem_w, mem_b=mem_b,
        dec_in_w=dec_in_w, dec_in_b=dec_in_b,
        out_w=out_w, out_b=out_b,
    )


# ---------------------------------- main -----------------------------------

if __name__ == "__main__":
    key = jax.random.PRNGKey(0)
    B, S_src, S_tgt = 2, 8, 8
    src_vocab, tgt_vocab = 50, 40
    d_src, d_tgt = 32, 64               # small analogues of 200 / 768
    nhead, n_enc, n_dec, ff_dim = 4, 3, 3, 64

    kp, kid, ktgt = jax.random.split(key, 3)
    params = init_params(kp, src_vocab, tgt_vocab, d_src, d_tgt,
                         nhead, n_enc, n_dec, ff_dim)

    src_input_ids = jax.random.randint(kid, (B, S_src), 0, src_vocab)
    tgt_embeddings = jax.random.normal(ktgt, (B, S_tgt, d_tgt), jnp.float32)

    # padding masks: True = pad (PyTorch key_padding_mask convention)
    src_padding_mask = jnp.zeros((B, S_src), dtype=bool).at[1, -2:].set(True)
    tgt_padding_mask = jnp.zeros((B, S_tgt), dtype=bool).at[1, -1:].set(True)
    # causal mask, like nn.Transformer.generate_square_subsequent_mask (additive)
    tgt_mask = jnp.where(jnp.triu(jnp.ones((S_tgt, S_tgt), dtype=bool), k=1),
                         NEG_INF, 0.0).astype(jnp.float32)

    logits = transformer_nmt_forward(params, src_input_ids, tgt_embeddings,
                                     src_padding_mask, tgt_padding_mask, tgt_mask,
                                     nhead=nhead)
    jax.block_until_ready(logits)
    assert logits.shape == (B, S_tgt, tgt_vocab)
    assert bool(jnp.all(jnp.isfinite(logits)))
    print("KERNEL_OK")
</pallas_src>

<mosaic_0001>
module attributes {stable_mosaic.version = 11 : i64} {
  func.func @_matmul_kernel(%arg0: i32, %arg1: i32, %arg2: i32, %arg3: memref<16x128xbf16, #tpu.memory_space<vmem>>, %arg4: memref<128x128xbf16, #tpu.memory_space<vmem>>, %arg5: memref<1x128xf32, #tpu.memory_space<vmem>>, %arg6: memref<16x128xf32, #tpu.memory_space<vmem>>, %arg7: memref<16x128xf32, #tpu.memory_space<vmem>>) attributes {dimension_semantics = [#tpu.dimension_semantics<parallel>, #tpu.dimension_semantics<parallel>, #tpu.dimension_semantics<arbitrary>], iteration_bounds = array<i64: 1, 1, 1>, scalar_prefetch = 0 : i64, scratch_operands = 1 : i64, tpu.core_type = #tpu.core_type<tc>, window_params = [{transform_indices = @transform_0, window_bounds = array<i64: 16, 128>}, {transform_indices = @transform_1, window_bounds = array<i64: 128, 128>}, {transform_indices = @transform_2, window_bounds = array<i64: 1, 128>}, {transform_indices = @transform_3, window_bounds = array<i64: 16, 128>}]} {
    %c0_i32 = arith.constant 0 : i32
    %0 = arith.cmpi eq, %arg2, %c0_i32 : i32
    %1 = arith.extui %0 : i1 to i32
    %c0_i32_0 = arith.constant 0 : i32
    %2 = arith.cmpi ne, %1, %c0_i32_0 : i32
    scf.if %2 {
      %cst_10 = arith.constant 0.000000e+00 : f32
      %12 = vector.broadcast %cst_10 : f32 to vector<16x128xf32>
      %c0_11 = arith.constant 0 : index
      %c0_12 = arith.constant 0 : index
      %13 = vector.load %arg7[%c0_11, %c0_12] : memref<16x128xf32, #tpu.memory_space<vmem>>, vector<16x128xf32>
      tpu.vector_store %arg7[%c0_11, %c0_12], %12 {strides = array<i32>} : memref<16x128xf32, #tpu.memory_space<vmem>>, vector<16x128xf32>,
    } else {
    }
    %c0 = arith.constant 0 : index
    %c0_1 = arith.constant 0 : index
    %3 = vector.load %arg7[%c0, %c0_1] : memref<16x128xf32, #tpu.memory_space<vmem>>, vector<16x128xf32>
    %c0_2 = arith.constant 0 : index
    %c0_3 = arith.constant 0 : index
    %4 = vector.load %arg3[%c0_2, %c0_3] : memref<16x128xbf16, #tpu.memory_space<vmem>>, vector<16x128xbf16>
    %c0_4 = arith.constant 0 : index
    %c0_5 = arith.constant 0 : index
    %5 = vector.load %arg4[%c0_4, %c0_5] : memref<128x128xbf16, #tpu.memory_space<vmem>>, vector<128x128xbf16>
    %cst = arith.constant dense<0.000000e+00> : vector<16x128xf32>
    %6 = tpu.matmul %4, %5, %cst {dimension_numbers = #tpu.dot_dimension_numbers<[1], [0], [0], [1], [0, 0, 1, 1], [], []>} : vector<16x128xbf16>, vector<128x128xbf16>, vector<16x128xf32> -> vector<16x128xf32>
    %7 = arith.addf %3, %6 : vector<16x128xf32>
    %c0_6 = arith.constant 0 : index
    %c0_7 = arith.constant 0 : index
    %8 = vector.load %arg7[%c0_6, %c0_7] : memref<16x128xf32, #tpu.memory_space<vmem>>, vector<16x128xf32>
    tpu.vector_store %arg7[%c0_6, %c0_7], %7 {strides = array<i32>} : memref<16x128xf32, #tpu.memory_space<vmem>>, vector<16x128xf32>,
    %c0_i32_8 = arith.constant 0 : i32
    %9 = arith.cmpi eq, %arg2, %c0_i32_8 : i32
    %10 = arith.extui %9 : i1 to i32
    %c0_i32_9 = arith.constant 0 : i32
    %11 = arith.cmpi ne, %10, %c0_i32_9 : i32
    scf.if %11 {
      %c0_10 = arith.constant 0 : index
      %c0_11 = arith.constant 0 : index
      %12 = vector.load %arg7[%c0_10, %c0_11] : memref<16x128xf32, #tpu.memory_space<vmem>>, vector<16x128xf32>
      %c0_12 = arith.constant 0 : index
      %c0_13 = arith.constant 0 : index
      %13 = vector.load %arg5[%c0_12, %c0_13] : memref<1x128xf32, #tpu.memory_space<vmem>>, vector<1x128xf32>
      %14 = vector.broadcast %13 : vector<1x128xf32> to vector<16x128xf32>
      %15 = arith.addf %12, %14 : vector<16x128xf32>
      %c0_14 = arith.constant 0 : index
      %c0_15 = arith.constant 0 : index
      %16 = vector.load %arg6[%c0_14, %c0_15] : memref<16x128xf32, #tpu.memory_space<vmem>>, vector<16x128xf32>
      tpu.vector_store %arg6[%c0_14, %c0_15], %15 {strides = array<i32>} : memref<16x128xf32, #tpu.memory_space<vmem>>, vector<16x128xf32>,
    } else {
    }
    return
  }
  func.func @transform_0(%arg0: i32, %arg1: i32, %arg2: i32) -> (i32, i32) {
    %c0_i32 = arith.constant 0 : i32
    return %arg0, %arg2 : i32, i32
  }
  func.func @transform_1(%arg0: i32, %arg1: i32, %arg2: i32) -> (i32, i32) {
    %c0_i32 = arith.constant 0 : i32
    return %arg2, %arg1 : i32, i32
  }
  func.func @transform_2(%arg0: i32, %arg1: i32, %arg2: i32) -> (i32, i32) {
    %c0_i32 = arith.constant 0 : i32
    %c0_i32_0 = arith.constant 0 : i32
    return %c0_i32, %arg1 : i32, i32
  }
  func.func @transform_3(%arg0: i32, %arg1: i32, %arg2: i32) -> (i32, i32) {
    %c0_i32 = arith.constant 0 : i32
    return %arg0, %arg1 : i32, i32
  }
}

</mosaic_0001>

<llo_original>
// kernel: tpu_custom_call.1
$region0: #{tpu_custom_call.1}
  #allocation0 [shape = 'u32[]', space=smem, size = 0x4, offset = 0x4, fixed_abs, tag = 'smem constant byte address 0x4 - core index']
  #allocation1 [shape = 'u32[144,128]{1,0:T(1,128)}', space=vmem, size = 0x12000, scoped, tag = 'internal scratch']
  #allocation2 [shape = 'f32[16,128]{1,0:T(8,128)}', space=vmem, size = 0x2000, scoped, tag = 'scratch operand']
  %s0 = inlined_call_operand.hbm [shape: bf16[16,128], index: 0, kind: input, shape index: {}]
  %s1 = inlined_call_operand.hbm [shape: bf16[128,128], index: 1, kind: input, shape index: {}]
  %s2 = inlined_call_operand.vmem [shape: f32[1,128], index: 2, kind: input, shape index: {}]
  %s3 = inlined_call_operand.hbm [shape: f32[16,128], index: 3, kind: output, shape index: {}]
  %s4 = sld [smem:[#allocation0]]
  $region38: #{tpu_custom_call.1} parent=0
    _
  %s6 = ssub.s32 1, %s4
  %s7 = scalar_select 0, %s6, %s4
  $region1: #{tpu_custom_call.1} parent=0
    #allocation3 [shape = 'u8[4096]{0}', space=vmem, size = 0x1000, scoped, tag = 'input window, operand 0, single buffered']
    #allocation4 [shape = 's32[1]{0}', space=sflag, size = 0x4, scoped, tag = 'scoped memory for tpu_custom_call.1']
    #allocation5 [shape = 's32[1]{0}', space=sflag, size = 0x4, scoped, tag = 'scoped memory for tpu_custom_call.1']
    #allocation6 [shape = 'u8[32768]{0}', space=vmem, size = 0x8000, scoped, tag = 'input window, operand 1, single buffered']
    #allocation7 [shape = 's32[1]{0}', space=sflag, size = 0x4, scoped, tag = 'scoped memory for tpu_custom_call.1']
    #allocation8 [shape = 'u8[8192]{0}', space=vmem, size = 0x2000, scoped, tag = 'output window, operand 0, single buffered']
    %8 = vsyncpa [#allocation4], 0
    %9 = vsyncpa [#allocation7], 0
    %10 = vsyncpa [#allocation5], 0
    // Predicated region
    $region2: #{tpu_custom_call.1} parent=1 // pred_check
      _
    $region3: #{tpu_custom_call.1} parent=1 // pred_check_branch
      %12 = sbr.rel (0) target = $region5
    $region4: #{tpu_custom_call.1} parent=1 // pred_region
      %s14 = ssub.s32 128, 128
      %15 = vsyncadd [#allocation4], %s14
      %s16 = sshll.u32 [#allocation3], 4
      %s17 = int_to_ptr.vmem [resolvable:$true] %s16
      %22 = dma.hbm_to_vmem [thread:$0]  %s0, 128, %s17, [#allocation4], 64, 64, 4
    $region5: #{tpu_custom_call.1} parent=1 // pred_fallthru
      _
    // Predicated region
    $region6: #{tpu_custom_call.1} parent=1 // pred_check
      _
    $region7: #{tpu_custom_call.1} parent=1 // pred_check_branch
      %24 = sbr.rel (0) target = $region9
    $region8: #{tpu_custom_call.1} parent=1 // pred_region
      %s26 = ssub.s32 1024, 1024
      %27 = vsyncadd [#allocation7], %s26
      %s28 = sshll.u32 [#allocation6], 4
      %s29 = int_to_ptr.vmem [resolvable:$true] %s28
      %34 = dma.hbm_to_vmem [thread:$0]  %s1, 1024, %s29, [#allocation7], 64, 64, 4
    $region9: #{tpu_custom_call.1} parent=1 // pred_fallthru
      _
    // Predicated region
    $region10: #{tpu_custom_call.1} parent=1 // pred_check
      _
    $region11: #{tpu_custom_call.1} parent=1 // pred_check_branch
      %36 = sbr.rel (0) target = $region13
    $region12: #{tpu_custom_call.1} parent=1 // pred_region
      _
    $region13: #{tpu_custom_call.1} parent=1 // pred_fallthru
      _
    // Predicated region
    $region14: #{tpu_custom_call.1} parent=1 // pred_check
      _
    $region15: #{tpu_custom_call.1} parent=1 // pred_check_branch
      %38 = sbr.rel (0) target = $region17
    $region16: #{tpu_custom_call.1} parent=1 // pred_region
      %39 = dma.done [#allocation4], 128
    $region17: #{tpu_custom_call.1} parent=1 // pred_fallthru
      _
    // Predicated region
    $region18: #{tpu_custom_call.1} parent=1 // pred_check
      _
    $region19: #{tpu_custom_call.1} parent=1 // pred_check_branch
      %41 = sbr.rel (0) target = $region21
    $region20: #{tpu_custom_call.1} parent=1 // pred_region
      %42 = dma.done [#allocation7], 1024
    $region21: #{tpu_custom_call.1} parent=1 // pred_fallthru
      _
    %p44 = scmp.eq.s32.totalorder 0, 0
    // Predicated region
    $region22: #{tpu_custom_call.1} parent=1 // pred_check
      %p45 = pneg %p44
    $region23: #{tpu_custom_call.1} parent=1 // pred_check_branch
      %47 = sbr.rel (%p45) target = $region25
    $region24: #{tpu_custom_call.1} parent=1 // pred_region
      %48 = vst [vmem:[#allocation2] sm:$0xff] 0.0
      %49 = vst [vmem:[#allocation2 + $0x8] sm:$0xff] 0.0
    $region25: #{tpu_custom_call.1} parent=1 // pred_fallthru
      _
    %v50 = vld [vmem:[#allocation2] sm:$0xff]
    %v51 = vld [vmem:[#allocation2 + $0x8] sm:$0xff]
    %v52 = vld [vmem:[#allocation3] sm:$0xf]
    %v53 = vld [vmem:[#allocation3 + $0x4] sm:$0xf]
    %v54 = vld [vmem:[#allocation6] sm:$0xf]
    %v55 = vld [vmem:[#allocation6 + $0x4] sm:$0xf]
    %v56 = vld [vmem:[#allocation6 + $0x8] sm:$0xf]
    %v57 = vld [vmem:[#allocation6 + $0xc] sm:$0xf]
    %v58 = vld [vmem:[#allocation6 + $0x10] sm:$0xf]
    %v59 = vld [vmem:[#allocation6 + $0x14] sm:$0xf]
    %v60 = vld [vmem:[#allocation6 + $0x18] sm:$0xf]
    %v61 = vld [vmem:[#allocation6 + $0x1c] sm:$0xf]
    %v62 = vld [vmem:[#allocation6 + $0x20] sm:$0xf]
    %v63 = vld [vmem:[#allocation6 + $0x24] sm:$0xf]
    %v64 = vld [vmem:[#allocation6 + $0x28] sm:$0xf]
    %v65 = vld [vmem:[#allocation6 + $0x2c] sm:$0xf]
    %v66 = vld [vmem:[#allocation6 + $0x30] sm:$0xf]
    %v67 = vld [vmem:[#allocation6 + $0x34] sm:$0xf]
    %v68 = vld [vmem:[#allocation6 + $0x38] sm:$0xf]
    %v69 = vld [vmem:[#allocation6 + $0x3c] sm:$0xf]
    %v72 = vunpack.c.l.b16 %v52
    %v73 = vunpack.c.l.b16 %v53
    %v74 = vpack.c.b16 %v73, %v72
    %v92 = vunpack.c.l.b16 %v54
    %v93 = vunpack.c.l.b16 %v55
    %v94 = vunpack.c.l.b16 %v56
    %v95 = vunpack.c.l.b16 %v57
    %v96 = vunpack.c.l.b16 %v58
    %v97 = vunpack.c.l.b16 %v59
    %v98 = vunpack.c.l.b16 %v60
    %v99 = vunpack.c.l.b16 %v61
    %v100 = vunpack.c.l.b16 %v62
    %v101 = vunpack.c.l.b16 %v63
    %v102 = vunpack.c.l.b16 %v64
    %v103 = vunpack.c.l.b16 %v65
    %v104 = vunpack.c.l.b16 %v66
    %v105 = vunpack.c.l.b16 %v67
    %v106 = vunpack.c.l.b16 %v68
    %v107 = vunpack.c.l.b16 %v69
    %v108 = vpack.c.b16 %v93, %v92
    %v109 = vpack.c.b16 %v95, %v94
    %v110 = vpack.c.b16 %v97, %v96
    %v111 = vpack.c.b16 %v99, %v98
    %v112 = vpack.c.b16 %v101, %v100
    %v113 = vpack.c.b16 %v103, %v102
    %v114 = vpack.c.b16 %v105, %v104
    %v115 = vpack.c.b16 %v107, %v106
    %124 = vmatprep.subr.bf16.mxu0 0
    %125 = vmatpush1.bf16.msra.mxu0 %v108
    %126 = vmatprep.subr.bf16.mxu0 0
    %127 = vmatpush1.bf16.msra.mxu0 %v109
    %128 = vmatprep.subr.bf16.mxu0 0
    %129 = vmatpush1.bf16.msra.mxu0 %v110
    %130 = vmatprep.subr.bf16.mxu0 0
    %131 = vmatpush1.bf16.msra.mxu0 %v111
    %132 = vmatprep.subr.bf16.mxu0 0
    %133 = vmatpush1.bf16.msra.mxu0 %v112
    %134 = vmatprep.subr.bf16.mxu0 0
    %135 = vmatpush1.bf16.msra.mxu0 %v113
    %136 = vmatprep.subr.bf16.mxu0 0
    %137 = vmatpush1.bf16.msra.mxu0 %v114
    %138 = vmatprep.subr.bf16.mxu0 0
    %139 = vmatpush1.bf16.msra.mxu0 %v115
    %140 = vmatprep.subr.bf16.mxu0 0
    %141 = vmatpush1.bf16.msra.mxu0 0
    %142 = vmatprep.subr.bf16.mxu0 0
    %143 = vmatpush1.bf16.msra.mxu0 0
    %144 = vmatprep.subr.bf16.mxu0 0
    %145 = vmatpush1.bf16.msra.mxu0 0
    %146 = vmatprep.subr.bf16.mxu0 0
    %147 = vmatpush1.bf16.msra.mxu0 0
    %148 = vmatprep.subr.bf16.mxu0 0
    %149 = vmatpush1.bf16.msra.mxu0 0
    %150 = vmatprep.subr.bf16.mxu0 0
    %151 = vmatpush1.bf16.msra.mxu0 0
    %152 = vmatprep.subr.bf16.mxu0 0
    %153 = vmatpush1.bf16.msra.mxu0 0
    %154 = vmatprep.subr.bf16.mxu0 0
    %155 = vmatpush1.bf16.msra.mxu0 0
    %156 = vmatprep.mubr.bf16.mxu0 0
    %157 = vmatmul.mubr.bf16.gmra.mrb[0].mxu0 %v74
    %v158 = vpop.f32.mrb[0].mxu0
    %v159 = vadd.f32 0.0, %v158
    %v160 = vpop.f32.mrb[0].mxu0
    %v161 = vpop.f32.mrb[0].mxu0
    %v162 = vadd.f32 0.0, %v161
    %v163 = vpop.f32.mrb[0].mxu0
    %164 = vdwg.mxu0
    %v165 = vadd.f32 %v50, %v159
    %v166 = vadd.f32 %v51, %v162
    %167 = vst [vmem:[#allocation2] sm:$0xff] %v165
    %168 = vst [vmem:[#allocation2 + $0x8] sm:$0xff] %v166
    // Predicated region
    $region26: #{tpu_custom_call.1} parent=1 // pred_check
      %p169 = pneg %p44
    $region27: #{tpu_custom_call.1} parent=1 // pred_check_branch
      %171 = sbr.rel (%p169) target = $region29
    $region28: #{tpu_custom_call.1} parent=1 // pred_region
      %v172 = vld [vmem:[#allocation2] sm:$0xff]
      %v173 = vld [vmem:[#allocation2 + $0x8] sm:$0xff]
      %v174 = vld [vmem:[%s2] sm:$0x1]
      %v176 = vlaneseq
      %v177 = vshrl.u32 %v176, 7
      %v178 = vsub.s32 0, %v177
      %v179 = vrot.slane %v174, %v178
      %v181 = vadd.f32 %v172, %v179
      %v182 = vadd.f32 %v173, %v179
      %183 = vst [vmem:[#allocation8] sm:$0xff] %v181
      %184 = vst [vmem:[#allocation8 + $0x8] sm:$0xff] %v182
    $region29: #{tpu_custom_call.1} parent=1 // pred_fallthru
      _
    // Predicated region
    $region30: #{tpu_custom_call.1} parent=1 // pred_check
      _
    $region31: #{tpu_custom_call.1} parent=1 // pred_check_branch
      %186 = sbr.rel (0) target = $region33
    $region32: #{tpu_custom_call.1} parent=1 // pred_region
      %s188 = ssub.s32 256, 256
      %189 = vsyncadd [#allocation5], %s188
      %s190 = sshll.u32 [#allocation8], 4
      %s191 = int_to_ptr.vmem [resolvable:$true] %s190
      %196 = dma.vmem_to_hbm [thread:$0]  %s191, 256, %s3, [#allocation5], 128, 128, 8
    $region33: #{tpu_custom_call.1} parent=1 // pred_fallthru
      _
    // Predicated region
    $region34: #{tpu_custom_call.1} parent=1 // pred_check
      _
    $region35: #{tpu_custom_call.1} parent=1 // pred_check_branch
      %198 = sbr.rel (0) target = $region37
    $region36: #{tpu_custom_call.1} parent=1 // pred_region
      %199 = dma.done [#allocation5], 256
    $region37: #{tpu_custom_call.1} parent=1 // pred_fallthru
      _
    %200 = vsyncpa [#allocation4], 1
    %201 = vsyncpa [#allocation7], 1
    %202 = vsyncpa [#allocation5], 1

</llo_original>
